<compile_context>
chip_gen: v7x
topology: tpu7x:2x2x1
jax: 0.10.0
libtpu: 0.0.40
codegen_flags: <defaults>
</compile_context>

<pallas_src>
import jax
import jax.numpy as jnp
import numpy as np
from jax.experimental import pallas as pl
from jax.experimental.pallas import tpu as pltpu


def _global_attention_kernel(inp_ref, ctx_ref, wax_ref, wac_ref, va_ref,
                             wctx_ref, attn_ref):
    # Per-grid-step views:
    #   inp_ref : (TB, D)      query rows
    #   ctx_ref : (TB, L, D)   context rows
    #   wax_ref : (D, D)       query half of Wa, pre-transposed
    #   wac_ref : (D, D)       context half of Wa, pre-transposed
    #   va_ref  : (1, D)       Va row vector
    #   wctx_ref: (TB, D)      attn_ref : (TB, L)
    ctx = ctx_ref[...]                                        # (TB, L, D)
    TB, L, D = ctx.shape

    # Query-side contribution of concat([x, c]) @ Wa^T, fused into the kernel
    # (small MXU matmul; removes the wrapper-side XLA op + HBM round trip).
    bias = jnp.dot(inp_ref[...], wax_ref[...],
                   preferred_element_type=jnp.float32)        # (TB, D)

    # Context-side: a single (TB*L, D) @ (D, D) MXU matmul per grid step.
    h = jnp.dot(ctx.reshape(TB * L, D), wac_ref[...],
                preferred_element_type=jnp.float32)
    h = jnp.tanh(h.reshape(TB, L, D) + bias[:, None, :])      # (TB, L, D)

    # Va scoring: VPU multiply + lane reduce (no transpose, no width-1 matmul).
    scores = jnp.sum(h * va_ref[...], axis=-1)                # (TB, L)

    # Softmax over L (nn.Softmax() applied to 2-D logits -> dim=1).
    m = jnp.max(scores, axis=-1, keepdims=True)
    e = jnp.exp(scores - m)
    attn = e / jnp.sum(e, axis=-1, keepdims=True)             # (TB, L)

    # weightedContext = bmm(attn.unsqueeze(1), context).squeeze(1):
    # VPU multiply + sublane reduce on the already-resident ctx tile instead
    # of TB separate M=1 MXU matmuls (avoids per-matmul result drains).
    wctx = jnp.sum(attn[:, :, None] * ctx, axis=1)            # (TB, D)

    wctx_ref[...] = wctx.astype(wctx_ref.dtype)
    attn_ref[...] = attn.astype(attn_ref.dtype)


def global_attention_concat(inp, ctx, wa, va, *, block_b=None):
    """Pallas forward of GlobalAttention with method='concat'.

    inp: (B, D) f32, ctx: (B, L, D) f32, wa: (D, 2D) f32, va: (1, D) f32
    returns (weightedContext (B, D), attn (B, L))
    """
    B, D = inp.shape
    _, L, _ = ctx.shape
    itemsize = jnp.dtype(ctx.dtype).itemsize

    # Split + pre-transpose Wa on the host: concat([x, c]) @ Wa^T
    #   == x @ Wa[:, :D]^T + c @ Wa[:, D:]^T.    (tiny one-time ops)
    wa_x_t = wa[:, :D].T                                      # (D, D)
    wa_c_t = wa[:, D:].T                                      # (D, D)

    # ---- batch-block sizing: byte budget derived from real VMEM capacity ---
    try:
        vmem_cap = int(pltpu.get_tpu_info().vmem_capacity_bytes)
    except Exception:
        vmem_cap = 64 << 20   # conservative fallback: v7x per-TensorCore VMEM

    # Live footprint per step ~ 2x double-buffered ctx tile + the f32 `h`
    # intermediate (same size as one ctx tile) + small IO tiles/weights.
    # Keep the whole thing near half of physical VMEM; cap a single ctx tile
    # at 12 MiB (HBM throughput saturates at multi-MiB tiles).
    ctx_tile_budget = min(12 << 20, (vmem_cap // 2) // 4)
    row_bytes = L * D * itemsize
    if block_b is None:
        block_b = max(1, ctx_tile_budget // row_bytes)

    if block_b >= B or B < 8:
        TB = B
    else:
        # Multiple-of-8 TB keeps the (TB, D)/(TB, L) tiles sublane-clean;
        # the overhanging last block (B % TB) is masked by Pallas.
        TB = max(8, (min(block_b, B) // 8) * 8)
    if B >= 16 and TB >= B:
        # v7x megacore: guarantee >= 2 grid steps so both TensorCores get work
        # (neutral on v5e/v6e).
        TB = max(8, ((B // 2) // 8) * 8)
    grid_b = pl.cdiv(B, TB)

    # Explicit scoped-VMEM limit sized to the actual footprint (the defaults,
    # 16 MiB on v5e / 32 MiB on v6e+, are well below physical capacity).
    ctx_tile = TB * L * D * itemsize
    est = (2 * ctx_tile + TB * L * D * 4        # ctx double-buffer + f32 `h`
           + 4 * TB * D * 4                     # inp + wctx tiles (2 buffers)
           + 2 * TB * max(L, 128) * 4           # attn tile (lane-padded layout)
           + 2 * D * D * 4 + 128 * 4)           # resident weights + Va
    vmem_limit = int(min(vmem_cap * 9 // 10, max(est + (8 << 20), 32 << 20)))

    out_shape = (jax.ShapeDtypeStruct((B, D), jnp.float32),
                 jax.ShapeDtypeStruct((B, L), jnp.float32))

    def run(single_buffer_weights):
        # Grid-invariant weights: constant index_map keeps them resident; the
        # default pipeline still allocates 2 buffers, so request 1 to save
        # D*D*4 bytes each (meaningful headroom on v7x's 64 MiB VMEM).
        w_kwargs = ({"pipeline_mode": pl.Buffered(1)}
                    if single_buffer_weights else {})
        grid_spec = pltpu.PrefetchScalarGridSpec(
            num_scalar_prefetch=0,
            grid=(grid_b,),
            in_specs=[
                pl.BlockSpec((TB, D), lambda b: (b, 0)),           # queries
                pl.BlockSpec((TB, L, D), lambda b: (b, 0, 0)),     # context
                pl.BlockSpec((D, D), lambda b: (0, 0), **w_kwargs),   # Wa_x^T
                pl.BlockSpec((D, D), lambda b: (0, 0), **w_kwargs),   # Wa_c^T
                pl.BlockSpec((1, D), lambda b: (0, 0), **w_kwargs),   # Va
            ],
            out_specs=[
                pl.BlockSpec((TB, D), lambda b: (b, 0)),   # weightedContext
                pl.BlockSpec((TB, L), lambda b: (b, 0)),   # attn
            ],
        )
        return pl.pallas_call(
            _global_attention_kernel,
            out_shape=out_shape,
            grid_spec=grid_spec,
            compiler_params=pltpu.CompilerParams(
                dimension_semantics=("parallel",),
                vmem_limit_bytes=vmem_limit),
        )(inp, ctx, wa_x_t, wa_c_t, va)

    try:
        wctx, attn = run(single_buffer_weights=True)
    except Exception:
        # Fallback for Pallas builds without BlockSpec.pipeline_mode support.
        wctx, attn = run(single_buffer_weights=False)
    return wctx, attn


def _reference(inp, ctx, wa, va):
    # Pure-JAX reference mirroring the PyTorch concat path.
    B, D = inp.shape
    L = ctx.shape[1]
    xt = jnp.broadcast_to(inp[:, None, :], (B, L, D))
    ht_hs = jnp.concatenate([xt, ctx], axis=2)                 # (B, L, 2D)
    h = jnp.tanh(jnp.einsum('blk,dk->bld', ht_hs, wa))         # (B, L, D)
    scores = jnp.einsum('bld,d->bl', h, va[0])                 # (B, L)
    attn = jax.nn.softmax(scores, axis=1)
    wctx = jnp.einsum('bl,bld->bd', attn, ctx)
    return wctx, attn


if __name__ == "__main__":
    B, L, D = 2, 8, 32

    key = jax.random.PRNGKey(0)
    k_in, k_ctx, k_wa, k_va, k_wi = jax.random.split(key, 5)

    inp = jax.random.normal(k_in, (B, D), dtype=jnp.float32)
    ctx = jax.random.normal(k_ctx, (B, L, D), dtype=jnp.float32)

    # PyTorch nn.Linear(bias=False) default init: U(-1/sqrt(fan_in), +...)
    bound_wa = 1.0 / np.sqrt(2 * D)
    bound_va = 1.0 / np.sqrt(D)
    wa = jax.random.uniform(k_wa, (D, 2 * D), jnp.float32, -bound_wa, bound_wa)
    va = jax.random.uniform(k_va, (1, D), jnp.float32, -bound_va, bound_va)
    # linear_in exists in __init__ but is unused on the 'concat' path.
    _w_in = jax.random.uniform(k_wi, (D, D), jnp.float32,
                               -1.0 / np.sqrt(D), 1.0 / np.sqrt(D))
    # TODO(synk): applyMask / masked_fill_ path not exercised (self.mask is None by default).

    wctx, attn = global_attention_concat(inp, ctx, wa, va)
    jax.block_until_ready((wctx, attn))

    wctx_ref, attn_ref = _reference(inp, ctx, wa, va)
    np.testing.assert_allclose(np.asarray(wctx), np.asarray(wctx_ref),
                               rtol=1e-5, atol=1e-5)
    np.testing.assert_allclose(np.asarray(attn), np.asarray(attn_ref),
                               rtol=1e-5, atol=1e-5)

    print("KERNEL_OK")
</pallas_src>

<mosaic_0001>
module attributes {stable_mosaic.version = 11 : i64} {
  func.func @_global_attention_kernel(%arg0: i32, %arg1: memref<2x32xf32, #tpu.memory_space<vmem>>, %arg2: memref<2x8x32xf32, #tpu.memory_space<vmem>>, %arg3: memref<32x32xf32, #tpu.memory_space<vmem>>, %arg4: memref<32x32xf32, #tpu.memory_space<vmem>>, %arg5: memref<1x32xf32, #tpu.memory_space<vmem>>, %arg6: memref<2x32xf32, #tpu.memory_space<vmem>>, %arg7: memref<2x8xf32, #tpu.memory_space<vmem>>) attributes {dimension_semantics = [#tpu.dimension_semantics<parallel>], iteration_bounds = array<i64: 1>, scalar_prefetch = 0 : i64, scratch_operands = 0 : i64, tpu.core_type = #tpu.core_type<tc>, window_params = [{transform_indices = @transform_0, window_bounds = array<i64: 2, 32>}, {transform_indices = @transform_1, window_bounds = array<i64: 2, 8, 32>}, {pipeline_mode = #tpu.pipeline_mode<synchronous>, transform_indices = @transform_2, window_bounds = array<i64: 32, 32>}, {pipeline_mode = #tpu.pipeline_mode<synchronous>, transform_indices = @transform_3, window_bounds = array<i64: 32, 32>}, {pipeline_mode = #tpu.pipeline_mode<synchronous>, transform_indices = @transform_4, window_bounds = array<i64: 1, 32>}, {transform_indices = @transform_5, window_bounds = array<i64: 2, 32>}, {transform_indices = @transform_6, window_bounds = array<i64: 2, 8>}]} {
    %c0 = arith.constant 0 : index
    %c0_0 = arith.constant 0 : index
    %c0_1 = arith.constant 0 : index
    %0 = vector.load %arg2[%c0, %c0_0, %c0_1] : memref<2x8x32xf32, #tpu.memory_space<vmem>>, vector<2x8x32xf32>
    %c0_2 = arith.constant 0 : index
    %c0_3 = arith.constant 0 : index
    %1 = vector.load %arg1[%c0_2, %c0_3] : memref<2x32xf32, #tpu.memory_space<vmem>>, vector<2x32xf32>
    %c0_4 = arith.constant 0 : index
    %c0_5 = arith.constant 0 : index
    %2 = vector.load %arg3[%c0_4, %c0_5] : memref<32x32xf32, #tpu.memory_space<vmem>>, vector<32x32xf32>
    %cst = arith.constant dense<0.000000e+00> : vector<2x32xf32>
    %3 = tpu.matmul %1, %2, %cst {dimension_numbers = #tpu.dot_dimension_numbers<[1], [0], [0], [1], [0, 0, 1, 1], [], []>} : vector<2x32xf32>, vector<32x32xf32>, vector<2x32xf32> -> vector<2x32xf32>
    %4 = vector.shape_cast %0 : vector<2x8x32xf32> to vector<16x32xf32>
    %c0_6 = arith.constant 0 : index
    %c0_7 = arith.constant 0 : index
    %5 = vector.load %arg4[%c0_6, %c0_7] : memref<32x32xf32, #tpu.memory_space<vmem>>, vector<32x32xf32>
    %cst_8 = arith.constant dense<0.000000e+00> : vector<16x32xf32>
    %6 = tpu.matmul %4, %5, %cst_8 {dimension_numbers = #tpu.dot_dimension_numbers<[1], [0], [0], [1], [0, 0, 1, 1], [], []>} : vector<16x32xf32>, vector<32x32xf32>, vector<16x32xf32> -> vector<16x32xf32>
    %7 = vector.shape_cast %6 : vector<16x32xf32> to vector<2x8x32xf32>
    %8 = vector.shape_cast %3 : vector<2x32xf32> to vector<2x1x32xf32>
    %9 = vector.broadcast %8 : vector<2x1x32xf32> to vector<2x8x32xf32>
    %10 = arith.addf %7, %9 : vector<2x8x32xf32>
    %11 = math.tanh %10 : vector<2x8x32xf32>
    %c0_9 = arith.constant 0 : index
    %c0_10 = arith.constant 0 : index
    %12 = vector.load %arg5[%c0_9, %c0_10] : memref<1x32xf32, #tpu.memory_space<vmem>>, vector<1x32xf32>
    %13 = vector.shape_cast %12 : vector<1x32xf32> to vector<1x1x32xf32>
    %14 = vector.broadcast %13 : vector<1x1x32xf32> to vector<2x8x32xf32>
    %15 = arith.mulf %11, %14 : vector<2x8x32xf32>
    %cst_11 = arith.constant dense<0.000000e+00> : vector<2x8xf32>
    %16 = vector.multi_reduction <add>, %15, %cst_11 [2] : vector<2x8x32xf32> to vector<2x8xf32>
    %cst_12 = arith.constant dense<0xFF800000> : vector<2xf32>
    %17 = vector.multi_reduction <maximumf>, %16, %cst_12 [1] : vector<2x8xf32> to vector<2xf32>
    %18 = vector.shape_cast %17 : vector<2xf32> to vector<2x1xf32>
    %19 = vector.broadcast %18 : vector<2x1xf32> to vector<2x8xf32>
    %20 = arith.subf %16, %19 : vector<2x8xf32>
    %21 = math.exp %20 : vector<2x8xf32>
    %cst_13 = arith.constant dense<0.000000e+00> : vector<2xf32>
    %22 = vector.multi_reduction <add>, %21, %cst_13 [1] : vector<2x8xf32> to vector<2xf32>
    %23 = vector.shape_cast %22 : vector<2xf32> to vector<2x1xf32>
    %24 = vector.broadcast %23 : vector<2x1xf32> to vector<2x8xf32>
    %25 = arith.divf %21, %24 : vector<2x8xf32>
    %26 = vector.shape_cast %25 : vector<2x8xf32> to vector<2x8x1xf32>
    %27 = vector.broadcast %26 : vector<2x8x1xf32> to vector<2x8x32xf32>
    %28 = arith.mulf %27, %0 : vector<2x8x32xf32>
    %cst_14 = arith.constant dense<0.000000e+00> : vector<2x32xf32>
    %29 = vector.multi_reduction <add>, %28, %cst_14 [1] : vector<2x8x32xf32> to vector<2x32xf32>
    %c0_15 = arith.constant 0 : index
    %c0_16 = arith.constant 0 : index
    %30 = vector.load %arg6[%c0_15, %c0_16] : memref<2x32xf32, #tpu.memory_space<vmem>>, vector<2x32xf32>
    tpu.vector_store %arg6[%c0_15, %c0_16], %29 {strides = array<i32>} : memref<2x32xf32, #tpu.memory_space<vmem>>, vector<2x32xf32>,
    %c0_17 = arith.constant 0 : index
    %c0_18 = arith.constant 0 : index
    %31 = vector.load %arg7[%c0_17, %c0_18] : memref<2x8xf32, #tpu.memory_space<vmem>>, vector<2x8xf32>
    tpu.vector_store %arg7[%c0_17, %c0_18], %25 {strides = array<i32>} : memref<2x8xf32, #tpu.memory_space<vmem>>, vector<2x8xf32>,
    return
  }
  func.func @transform_0(%arg0: i32) -> (i32, i32) {
    %c0_i32 = arith.constant 0 : i32
    %c0_i32_0 = arith.constant 0 : i32
    return %arg0, %c0_i32 : i32, i32
  }
  func.func @transform_1(%arg0: i32) -> (i32, i32, i32) {
    %c0_i32 = arith.constant 0 : i32
    %c0_i32_0 = arith.constant 0 : i32
    %c0_i32_1 = arith.constant 0 : i32
    return %arg0, %c0_i32, %c0_i32_0 : i32, i32, i32
  }
  func.func @transform_2(%arg0: i32) -> (i32, i32) {
    %c0_i32 = arith.constant 0 : i32
    %c0_i32_0 = arith.constant 0 : i32
    %c0_i32_1 = arith.constant 0 : i32
    return %c0_i32, %c0_i32_0 : i32, i32
  }
  func.func @transform_3(%arg0: i32) -> (i32, i32) {
    %c0_i32 = arith.constant 0 : i32
    %c0_i32_0 = arith.constant 0 : i32
    %c0_i32_1 = arith.constant 0 : i32
    return %c0_i32, %c0_i32_0 : i32, i32
  }
  func.func @transform_4(%arg0: i32) -> (i32, i32) {
    %c0_i32 = arith.constant 0 : i32
    %c0_i32_0 = arith.constant 0 : i32
    %c0_i32_1 = arith.constant 0 : i32
    return %c0_i32, %c0_i32_0 : i32, i32
  }
  func.func @transform_5(%arg0: i32) -> (i32, i32) {
    %c0_i32 = arith.constant 0 : i32
    %c0_i32_0 = arith.constant 0 : i32
    return %arg0, %c0_i32 : i32, i32
  }
  func.func @transform_6(%arg0: i32) -> (i32, i32) {
    %c0_i32 = arith.constant 0 : i32
    %c0_i32_0 = arith.constant 0 : i32
    return %arg0, %c0_i32 : i32, i32
  }
}

module attributes {stable_mosaic.version = 11 : i64} {
  func.func @_global_attention_kernel(%arg0: i32, %arg1: memref<2x32xf32, #tpu.memory_space<vmem>>, %arg2: memref<2x8x32xf32, #tpu.memory_space<vmem>>, %arg3: memref<32x32xf32, #tpu.memory_space<vmem>>, %arg4: memref<32x32xf32, #tpu.memory_space<vmem>>, %arg5: memref<1x32xf32, #tpu.memory_space<vmem>>, %arg6: memref<2x32xf32, #tpu.memory_space<vmem>>, %arg7: memref<2x8xf32, #tpu.memory_space<vmem>>) attributes {dimension_semantics = [#tpu.dimension_semantics<parallel>], iteration_bounds = array<i64: 1>, scalar_prefetch = 0 : i64, scratch_operands = 0 : i64, tpu.core_type = #tpu.core_type<tc>, window_params = [{transform_indices = @transform_0, window_bounds = array<i64: 2, 32>}, {transform_indices = @transform_1, window_bounds = array<i64: 2, 8, 32>}, {pipeline_mode = #tpu.pipeline_mode<synchronous>, transform_indices = @transform_2, window_bounds = array<i64: 32, 32>}, {pipeline_mode = #tpu.pipeline_mode<synchronous>, transform_indices = @transform_3, window_bounds = array<i64: 32, 32>}, {pipeline_mode = #tpu.pipeline_mode<synchronous>, transform_indices = @transform_4, window_bounds = array<i64: 1, 32>}, {transform_indices = @transform_5, window_bounds = array<i64: 2, 32>}, {transform_indices = @transform_6, window_bounds = array<i64: 2, 8>}]} {
    %c0 = arith.constant 0 : index
    %c0_0 = arith.constant 0 : index
    %c0_1 = arith.constant 0 : index
    %0 = vector.load %arg2[%c0, %c0_0, %c0_1] : memref<2x8x32xf32, #tpu.memory_space<vmem>>, vector<2x8x32xf32>
    %c0_2 = arith.constant 0 : index
    %c0_3 = arith.constant 0 : index
    %1 = vector.load %arg1[%c0_2, %c0_3] : memref<2x32xf32, #tpu.memory_space<vmem>>, vector<2x32xf32>
    %c0_4 = arith.constant 0 : index
    %c0_5 = arith.constant 0 : index
    %2 = vector.load %arg3[%c0_4, %c0_5] : memref<32x32xf32, #tpu.memory_space<vmem>>, vector<32x32xf32>
    %cst = arith.constant dense<0.000000e+00> : vector<2x32xf32>
    %3 = tpu.matmul %1, %2, %cst {dimension_numbers = #tpu.dot_dimension_numbers<[1], [0], [0], [1], [0, 0, 1, 1], [], []>} : vector<2x32xf32>, vector<32x32xf32>, vector<2x32xf32> -> vector<2x32xf32>
    %4 = vector.shape_cast %0 : vector<2x8x32xf32> to vector<16x32xf32>
    %c0_6 = arith.constant 0 : index
    %c0_7 = arith.constant 0 : index
    %5 = vector.load %arg4[%c0_6, %c0_7] : memref<32x32xf32, #tpu.memory_space<vmem>>, vector<32x32xf32>
    %cst_8 = arith.constant dense<0.000000e+00> : vector<16x32xf32>
    %6 = tpu.matmul %4, %5, %cst_8 {dimension_numbers = #tpu.dot_dimension_numbers<[1], [0], [0], [1], [0, 0, 1, 1], [], []>} : vector<16x32xf32>, vector<32x32xf32>, vector<16x32xf32> -> vector<16x32xf32>
    %7 = vector.shape_cast %6 : vector<16x32xf32> to vector<2x8x32xf32>
    %8 = vector.shape_cast %3 : vector<2x32xf32> to vector<2x1x32xf32>
    %9 = vector.broadcast %8 : vector<2x1x32xf32> to vector<2x8x32xf32>
    %10 = arith.addf %7, %9 : vector<2x8x32xf32>
    %11 = math.tanh %10 : vector<2x8x32xf32>
    %c0_9 = arith.constant 0 : index
    %c0_10 = arith.constant 0 : index
    %12 = vector.load %arg5[%c0_9, %c0_10] : memref<1x32xf32, #tpu.memory_space<vmem>>, vector<1x32xf32>
    %13 = vector.shape_cast %12 : vector<1x32xf32> to vector<1x1x32xf32>
    %14 = vector.broadcast %13 : vector<1x1x32xf32> to vector<2x8x32xf32>
    %15 = arith.mulf %11, %14 : vector<2x8x32xf32>
    %cst_11 = arith.constant dense<0.000000e+00> : vector<2x8xf32>
    %16 = vector.multi_reduction <add>, %15, %cst_11 [2] : vector<2x8x32xf32> to vector<2x8xf32>
    %cst_12 = arith.constant dense<0xFF800000> : vector<2xf32>
    %17 = vector.multi_reduction <maximumf>, %16, %cst_12 [1] : vector<2x8xf32> to vector<2xf32>
    %18 = vector.shape_cast %17 : vector<2xf32> to vector<2x1xf32>
    %19 = vector.broadcast %18 : vector<2x1xf32> to vector<2x8xf32>
    %20 = arith.subf %16, %19 : vector<2x8xf32>
    %21 = math.exp %20 : vector<2x8xf32>
    %cst_13 = arith.constant dense<0.000000e+00> : vector<2xf32>
    %22 = vector.multi_reduction <add>, %21, %cst_13 [1] : vector<2x8xf32> to vector<2xf32>
    %23 = vector.shape_cast %22 : vector<2xf32> to vector<2x1xf32>
    %24 = vector.broadcast %23 : vector<2x1xf32> to vector<2x8xf32>
    %25 = arith.divf %21, %24 : vector<2x8xf32>
    %26 = vector.shape_cast %25 : vector<2x8xf32> to vector<2x8x1xf32>
    %27 = vector.broadcast %26 : vector<2x8x1xf32> to vector<2x8x32xf32>
    %28 = arith.mulf %27, %0 : vector<2x8x32xf32>
    %cst_14 = arith.constant dense<0.000000e+00> : vector<2x32xf32>
    %29 = vector.multi_reduction <add>, %28, %cst_14 [1] : vector<2x8x32xf32> to vector<2x32xf32>
    %c0_15 = arith.constant 0 : index
    %c0_16 = arith.constant 0 : index
    %30 = vector.load %arg6[%c0_15, %c0_16] : memref<2x32xf32, #tpu.memory_space<vmem>>, vector<2x32xf32>
    tpu.vector_store %arg6[%c0_15, %c0_16], %29 {strides = array<i32>} : memref<2x32xf32, #tpu.memory_space<vmem>>, vector<2x32xf32>,
    %c0_17 = arith.constant 0 : index
    %c0_18 = arith.constant 0 : index
    %31 = vector.load %arg7[%c0_17, %c0_18] : memref<2x8xf32, #tpu.memory_space<vmem>>, vector<2x8xf32>
    tpu.vector_store %arg7[%c0_17, %c0_18], %25 {strides = array<i32>} : memref<2x8xf32, #tpu.memory_space<vmem>>, vector<2x8xf32>,
    return
  }
  func.func @transform_0(%arg0: i32) -> (i32, i32) {
    %c0_i32 = arith.constant 0 : i32
    %c0_i32_0 = arith.constant 0 : i32
    return %arg0, %c0_i32 : i32, i32
  }
  func.func @transform_1(%arg0: i32) -> (i32, i32, i32) {
    %c0_i32 = arith.constant 0 : i32
    %c0_i32_0 = arith.constant 0 : i32
    %c0_i32_1 = arith.constant 0 : i32
    return %arg0, %c0_i32, %c0_i32_0 : i32, i32, i32
  }
  func.func @transform_2(%arg0: i32) -> (i32, i32) {
    %c0_i32 = arith.constant 0 : i32
    %c0_i32_0 = arith.constant 0 : i32
    %c0_i32_1 = arith.constant 0 : i32
    return %c0_i32, %c0_i32_0 : i32, i32
  }
  func.func @transform_3(%arg0: i32) -> (i32, i32) {
    %c0_i32 = arith.constant 0 : i32
    %c0_i32_0 = arith.constant 0 : i32
    %c0_i32_1 = arith.constant 0 : i32
    return %c0_i32, %c0_i32_0 : i32, i32
  }
  func.func @transform_4(%arg0: i32) -> (i32, i32) {
    %c0_i32 = arith.constant 0 : i32
    %c0_i32_0 = arith.constant 0 : i32
    %c0_i32_1 = arith.constant 0 : i32
    return %c0_i32, %c0_i32_0 : i32, i32
  }
  func.func @transform_5(%arg0: i32) -> (i32, i32) {
    %c0_i32 = arith.constant 0 : i32
    %c0_i32_0 = arith.constant 0 : i32
    return %arg0, %c0_i32 : i32, i32
  }
  func.func @transform_6(%arg0: i32) -> (i32, i32) {
    %c0_i32 = arith.constant 0 : i32
    %c0_i32_0 = arith.constant 0 : i32
    return %arg0, %c0_i32 : i32, i32
  }
}

</mosaic_0001>

<llo_original>
// kernel: tpu_custom_call.1
$region0: #{tpu_custom_call.1}
  #allocation0 [shape = 'u32[]', space=smem, size = 0x4, offset = 0x4, fixed_abs, tag = 'smem constant byte address 0x4 - core index']
  #allocation1 [shape = 'u32[144,128]{1,0:T(1,128)}', space=vmem, size = 0x12000, scoped, tag = 'internal scratch']
  %s0 = inlined_call_operand.hbm [shape: f32[2,32], index: 0, kind: input, shape index: {}]
  %s1 = inlined_call_operand.hbm [shape: f32[2,8,32], index: 1, kind: input, shape index: {}]
  %s2 = inlined_call_operand.hbm [shape: f32[32,32], index: 2, kind: input, shape index: {}]
  %s3 = inlined_call_operand.hbm [shape: f32[32,32], index: 3, kind: input, shape index: {}]
  %s4 = inlined_call_operand.vmem [shape: f32[1,32], index: 4, kind: input, shape index: {}]
  %s5 = inlined_call_operand.hbm [shape: f32[2,32], index: 5, kind: output, shape index: {0}]
  %s6 = inlined_call_operand.hbm [shape: f32[2,8], index: 6, kind: output, shape index: {1}]
  %7 = xla_tuple %s5, %s6
  %s8 = sld [smem:[#allocation0]]
  $region54: #{tpu_custom_call.1} parent=0
    _
  %s10 = ssub.s32 1, %s8
  %s11 = scalar_select 0, %s10, %s8
  $region1: #{tpu_custom_call.1} parent=0
    #allocation2 [shape = 'u8[1024]{0}', space=vmem, size = 0x400, scoped, tag = 'input window, operand 0, single buffered']
    #allocation3 [shape = 's32[1]{0}', space=sflag, size = 0x4, scoped, tag = 'scoped memory for tpu_custom_call.1']
    #allocation4 [shape = 's32[1]{0}', space=sflag, size = 0x4, scoped, tag = 'scoped memory for tpu_custom_call.1']
    #allocation5 [shape = 'u8[8192]{0}', space=vmem, size = 0x2000, scoped, tag = 'input window, operand 1, single buffered']
    #allocation6 [shape = 's32[1]{0}', space=sflag, size = 0x4, scoped, tag = 'scoped memory for tpu_custom_call.1']
    #allocation7 [shape = 'u8[16384]{0}', space=vmem, size = 0x4000, scoped, tag = 'input window, operand 2, single buffered']
    #allocation8 [shape = 'u8[16384]{0}', space=vmem, size = 0x4000, scoped, tag = 'input window, operand 3, single buffered']
    #allocation9 [shape = 's32[1]{0}', space=sflag, size = 0x4, scoped, tag = 'scoped memory for tpu_custom_call.1']
    #allocation10 [shape = 'u8[1024]{0}', space=vmem, size = 0x400, scoped, tag = 'output window, operand 0, single buffered']
    #allocation11 [shape = 'u8[1024]{0}', space=vmem, size = 0x400, scoped, tag = 'output window, operand 1, single buffered']
    #allocation12 [shape = 's32[1]{0}', space=sflag, size = 0x4, scoped, tag = 'scoped memory for tpu_custom_call.1']
    %12 = vsyncpa [#allocation3], 0
    %13 = vsyncpa [#allocation6], 0
    %14 = vsyncpa [#allocation9], 0
    %15 = vsyncpa [#allocation4], 0
    %16 = vsyncpa [#allocation12], 0
    // Predicated region
    $region2: #{tpu_custom_call.1} parent=1 // pred_check
      _
    $region3: #{tpu_custom_call.1} parent=1 // pred_check_branch
      %18 = sbr.rel (0) target = $region5
    $region4: #{tpu_custom_call.1} parent=1 // pred_region
      %s20 = ssub.s32 32, 32
      %21 = vsyncadd [#allocation3], %s20
      %s23 = sshll.u32 [#allocation2], 4
      %s24 = int_to_ptr.vmem [resolvable:$true] %s23
      %26 = dma.hbm_to_vmem [thread:$0]  %s0, 32, %s24, [#allocation3]
    $region5: #{tpu_custom_call.1} parent=1 // pred_fallthru
      _
    // Predicated region
    $region6: #{tpu_custom_call.1} parent=1 // pred_check
      _
    $region7: #{tpu_custom_call.1} parent=1 // pred_check_branch
      %28 = sbr.rel (0) target = $region9
    $region8: #{tpu_custom_call.1} parent=1 // pred_region
      %s30 = ssub.s32 256, 256
      %31 = vsyncadd [#allocation6], %s30
      %s32 = sshll.u32 [#allocation5], 4
      %s33 = int_to_ptr.vmem [resolvable:$true] %s32
      %38 = dma.hbm_to_vmem [thread:$0]  %s1, 256, %s33, [#allocation6], 128, 128, 8
    $region9: #{tpu_custom_call.1} parent=1 // pred_fallthru
      _
    // Predicated region
    $region10: #{tpu_custom_call.1} parent=1 // pred_check
      _
    $region11: #{tpu_custom_call.1} parent=1 // pred_check_branch
      %40 = sbr.rel (0) target = $region13
    $region12: #{tpu_custom_call.1} parent=1 // pred_region
      %s42 = ssub.s32 512, 512
      %43 = vsyncadd [#allocation6], %s42
      %s44 = sshll.u32 [#allocation7], 4
      %s45 = int_to_ptr.vmem [resolvable:$true] %s44
      %50 = dma.hbm_to_vmem [thread:$0]  %s2, 512, %s45, [#allocation6], 128, 128, 8
    $region13: #{tpu_custom_call.1} parent=1 // pred_fallthru
      _
    // Predicated region
    $region14: #{tpu_custom_call.1} parent=1 // pred_check
      _
    $region15: #{tpu_custom_call.1} parent=1 // pred_check_branch
      %52 = sbr.rel (0) target = $region17
    $region16: #{tpu_custom_call.1} parent=1 // pred_region
      %s54 = ssub.s32 512, 512
      %55 = vsyncadd [#allocation9], %s54
      %s56 = sshll.u32 [#allocation8], 4
      %s57 = int_to_ptr.vmem [resolvable:$true] %s56
      %62 = dma.hbm_to_vmem [thread:$0]  %s3, 512, %s57, [#allocation9], 128, 128, 8
    $region17: #{tpu_custom_call.1} parent=1 // pred_fallthru
      _
    // Predicated region
    $region18: #{tpu_custom_call.1} parent=1 // pred_check
      _
    $region19: #{tpu_custom_call.1} parent=1 // pred_check_branch
      %64 = sbr.rel (0) target = $region21
    $region20: #{tpu_custom_call.1} parent=1 // pred_region
      _
    $region21: #{tpu_custom_call.1} parent=1 // pred_fallthru
      _
    // Predicated region
    $region22: #{tpu_custom_call.1} parent=1 // pred_check
      _
    $region23: #{tpu_custom_call.1} parent=1 // pred_check_branch
      %66 = sbr.rel (0) target = $region25
    $region24: #{tpu_custom_call.1} parent=1 // pred_region
      %67 = dma.done [#allocation3], 32
    $region25: #{tpu_custom_call.1} parent=1 // pred_fallthru
      _
    // Predicated region
    $region26: #{tpu_custom_call.1} parent=1 // pred_check
      _
    $region27: #{tpu_custom_call.1} parent=1 // pred_check_branch
      %69 = sbr.rel (0) target = $region29
    $region28: #{tpu_custom_call.1} parent=1 // pred_region
      %70 = dma.done [#allocation6], 256
    $region29: #{tpu_custom_call.1} parent=1 // pred_fallthru
      _
    // Predicated region
    $region30: #{tpu_custom_call.1} parent=1 // pred_check
      _
    $region31: #{tpu_custom_call.1} parent=1 // pred_check_branch
      %72 = sbr.rel (0) target = $region33
    $region32: #{tpu_custom_call.1} parent=1 // pred_region
      %73 = dma.done [#allocation6], 512
    $region33: #{tpu_custom_call.1} parent=1 // pred_fallthru
      _
    // Predicated region
    $region34: #{tpu_custom_call.1} parent=1 // pred_check
      _
    $region35: #{tpu_custom_call.1} parent=1 // pred_check_branch
      %75 = sbr.rel (0) target = $region37
    $region36: #{tpu_custom_call.1} parent=1 // pred_region
      %76 = dma.done [#allocation9], 512
    $region37: #{tpu_custom_call.1} parent=1 // pred_fallthru
      _
    %v77 = vld [vmem:[#allocation5] sm:$0xff]
    %v78 = vld [vmem:[#allocation5 + $0x8] sm:$0xff]
    %v79 = vld [vmem:[#allocation2] sm:$0x3]
    %v80 = vld [vmem:[#allocation7] sm:$0xff]
    %v81 = vld [vmem:[#allocation7 + $0x8] sm:$0xff]
    %v82 = vld [vmem:[#allocation7 + $0x10] sm:$0xff]
    %v83 = vld [vmem:[#allocation7 + $0x18] sm:$0xff]
    %vm84 = vcmask 261120
    %v86 = vsel %vm84, %v79, 0
    %88 = vmatprep.subr.mxu0 0.0
    %89 = vmatpush1.msra.mxu0 %v80
    %90 = vmatprep.subr.mxu0 0.0
    %91 = vmatpush1.msra.mxu0 %v81
    %92 = vmatprep.subr.mxu0 0.0
    %93 = vmatpush1.msra.mxu0 %v82
    %94 = vmatprep.subr.mxu0 0.0
    %95 = vmatpush1.msra.mxu0 %v83
    %96 = vmatprep.subr.mxu0 0.0
    %97 = vmatpush1.msra.mxu0 0.0
    %98 = vmatprep.subr.mxu0 0.0
    %99 = vmatpush1.msra.mxu0 0.0
    %100 = vmatprep.subr.mxu0 0.0
    %101 = vmatpush1.msra.mxu0 0.0
    %102 = vmatprep.subr.mxu0 0.0
    %103 = vmatpush1.msra.mxu0 0.0
    %104 = vmatprep.subr.mxu0 0.0
    %105 = vmatpush1.msra.mxu0 0.0
    %106 = vmatprep.subr.mxu0 0.0
    %107 = vmatpush1.msra.mxu0 0.0
    %108 = vmatprep.subr.mxu0 0.0
    %109 = vmatpush1.msra.mxu0 0.0
    %110 = vmatprep.subr.mxu0 0.0
    %111 = vmatpush1.msra.mxu0 0.0
    %112 = vmatprep.subr.mxu0 0.0
    %113 = vmatpush1.msra.mxu0 0.0
    %114 = vmatprep.subr.mxu0 0.0
    %115 = vmatpush1.msra.mxu0 0.0
    %116 = vmatprep.subr.mxu0 0.0
    %117 = vmatpush1.msra.mxu0 0.0
    %118 = vmatprep.subr.mxu0 0.0
    %119 = vmatpush1.msra.mxu0 0.0
    %120 = vmatprep.subr.mxu0 0.0
    %121 = vmatpush1.msra.mxu0 0.0
    %122 = vmatprep.subr.mxu0 0.0
    %123 = vmatpush1.msra.mxu0 0.0
    %124 = vmatprep.subr.mxu0 0.0
    %125 = vmatpush1.msra.mxu0 0.0
    %126 = vmatprep.subr.mxu0 0.0
    %127 = vmatpush1.msra.mxu0 0.0
    %128 = vmatprep.subr.mxu0 0.0
    %129 = vmatpush1.msra.mxu0 0.0
    %130 = vmatprep.subr.mxu0 0.0
    %131 = vmatpush1.msra.mxu0 0.0
    %132 = vmatprep.subr.mxu0 0.0
    %133 = vmatpush1.msra.mxu0 0.0
    %134 = vmatprep.subr.mxu0 0.0
    %135 = vmatpush1.msra.mxu0 0.0
    %136 = vmatprep.subr.mxu0 0.0
    %137 = vmatpush1.msra.mxu0 0.0
    %138 = vmatprep.subr.mxu0 0.0
    %139 = vmatpush1.msra.mxu0 0.0
    %140 = vmatprep.subr.mxu0 0.0
    %141 = vmatpush1.msra.mxu0 0.0
    %142 = vmatprep.subr.mxu0 0.0
    %143 = vmatpush1.msra.mxu0 0.0
    %144 = vmatprep.subr.mxu0 0.0
    %145 = vmatpush1.msra.mxu0 0.0
    %146 = vmatprep.subr.mxu0 0.0
    %147 = vmatpush1.msra.mxu0 0.0
    %148 = vmatprep.subr.mxu0 0.0
    %149 = vmatpush1.msra.mxu0 0.0
    %150 = vmatprep.subr.mxu0 0.0
    %151 = vmatpush1.msra.mxu0 0.0
    %152 = vmatprep.mubr.f32.mxu0 0.0
    %153 = vmatmul.mubr.f32.gmra.mrb[0].mxu0 %v86
    %v154 = vpop.f32.mrb[0].mxu0
    %v155 = vadd.f32 0.0, %v154
    %v156 = vpop.f32.mrb[0].mxu0
    %157 = vdwg.mxu0
    %v158 = vld [vmem:[#allocation8] sm:$0xff]
    %v159 = vld [vmem:[#allocation8 + $0x8] sm:$0xff]
    %v160 = vld [vmem:[#allocation8 + $0x10] sm:$0xff]
    %v161 = vld [vmem:[#allocation8 + $0x18] sm:$0xff]
    %v163 = vsel %vm84, %v77, 0
    %v166 = vsel %vm84, %v78, 0
    %168 = vmatprep.subr.mxu0 0.0
    %169 = vmatpush1.msra.mxu0 %v158
    %170 = vmatprep.subr.mxu0 0.0
    %171 = vmatpush1.msra.mxu0 %v159
    %172 = vmatprep.subr.mxu0 0.0
    %173 = vmatpush1.msra.mxu0 %v160
    %174 = vmatprep.subr.mxu0 0.0
    %175 = vmatpush1.msra.mxu0 %v161
    %176 = vmatprep.subr.mxu0 0.0
    %177 = vmatpush1.msra.mxu0 0.0
    %178 = vmatprep.subr.mxu0 0.0
    %179 = vmatpush1.msra.mxu0 0.0
    %180 = vmatprep.subr.mxu0 0.0
    %181 = vmatpush1.msra.mxu0 0.0
    %182 = vmatprep.subr.mxu0 0.0
    %183 = vmatpush1.msra.mxu0 0.0
    %184 = vmatprep.subr.mxu0 0.0
    %185 = vmatpush1.msra.mxu0 0.0
    %186 = vmatprep.subr.mxu0 0.0
    %187 = vmatpush1.msra.mxu0 0.0
    %188 = vmatprep.subr.mxu0 0.0
    %189 = vmatpush1.msra.mxu0 0.0
    %190 = vmatprep.subr.mxu0 0.0
    %191 = vmatpush1.msra.mxu0 0.0
    %192 = vmatprep.subr.mxu0 0.0
    %193 = vmatpush1.msra.mxu0 0.0
    %194 = vmatprep.subr.mxu0 0.0
    %195 = vmatpush1.msra.mxu0 0.0
    %196 = vmatprep.subr.mxu0 0.0
    %197 = vmatpush1.msra.mxu0 0.0
    %198 = vmatprep.subr.mxu0 0.0
    %199 = vmatpush1.msra.mxu0 0.0
    %200 = vmatprep.subr.mxu0 0.0
    %201 = vmatpush1.msra.mxu0 0.0
    %202 = vmatprep.subr.mxu0 0.0
    %203 = vmatpush1.msra.mxu0 0.0
    %204 = vmatprep.subr.mxu0 0.0
    %205 = vmatpush1.msra.mxu0 0.0
    %206 = vmatprep.subr.mxu0 0.0
    %207 = vmatpush1.msra.mxu0 0.0
    %208 = vmatprep.subr.mxu0 0.0
    %209 = vmatpush1.msra.mxu0 0.0
    %210 = vmatprep.subr.mxu0 0.0
    %211 = vmatpush1.msra.mxu0 0.0
    %212 = vmatprep.subr.mxu0 0.0
    %213 = vmatpush1.msra.mxu0 0.0
    %214 = vmatprep.subr.mxu0 0.0
    %215 = vmatpush1.msra.mxu0 0.0
    %216 = vmatprep.subr.mxu0 0.0
    %217 = vmatpush1.msra.mxu0 0.0
    %218 = vmatprep.subr.mxu0 0.0
    %219 = vmatpush1.msra.mxu0 0.0
    %220 = vmatprep.subr.mxu0 0.0
    %221 = vmatpush1.msra.mxu0 0.0
    %222 = vmatprep.subr.mxu0 0.0
    %223 = vmatpush1.msra.mxu0 0.0
    %224 = vmatprep.subr.mxu0 0.0
    %225 = vmatpush1.msra.mxu0 0.0
    %226 = vmatprep.subr.mxu0 0.0
    %227 = vmatpush1.msra.mxu0 0.0
    %228 = vmatprep.subr.mxu0 0.0
    %229 = vmatpush1.msra.mxu0 0.0
    %230 = vmatprep.subr.mxu0 0.0
    %231 = vmatpush1.msra.mxu0 0.0
    %232 = vmatprep.mubr.f32.mxu0 0.0
    %233 = vmatmul.mubr.f32.gmra.mrb[0].mxu0 %v163
    %v234 = vpop.f32.mrb[0].mxu0
    %v235 = vadd.f32 0.0, %v234
    %v236 = vpop.f32.mrb[0].mxu0
    %237 = vmatprep.mubr.f32.mxu0 0.0
    %238 = vmatmul.mubr.f32.gmra.mrb[0].mxu0 %v166
    %v239 = vpop.f32.mrb[0].mxu0
    %v240 = vadd.f32 0.0, %v239
    %v241 = vpop.f32.mrb[0].mxu0
    %242 = vdwg.mxu0
    %v245 = vunpack.c.l.s4 1966171168
    %v246 = vunpack.c.0.s8 %v245
    %v247 = vlaneseq
    %v248 = vshrl.u32 %v247, 7
    %v249 = vsub.s32 %v246, %v248
    %v250 = vrot.slane %v155, %v249
    %v251 = vcombine.high %v250, %v250
    %v253 = vunpack.c.l.s4 1966171168
    %v254 = vunpack.c.0.s8 %v253
    %v255 = vlaneseq
    %v256 = vshrl.u32 %v255, 7
    %v257 = vsub.s32 %v254, %v256
    %v258 = vrot.slane %v250, %v257
    %v260 = vunpack.c.l.s4 1966171168
    %v261 = vunpack.c.0.s8 %v260
    %v262 = vlaneseq
    %v263 = vshrl.u32 %v262, 7
    %v264 = vsub.s32 %v261, %v263
    %v265 = vrot.slane %v251, %v264
    %v266 = vlaneseq
    %v267 = vshrl.u32 %v266, 7
    %v268 = vsub.s32 0, %v267
    %v269 = vrot.slane %v258, %v268
    %v270 = vlaneseq
    %v271 = vshrl.u32 %v270, 7
    %v272 = vsub.s32 0, %v271
    %v273 = vrot.slane %v265, %v272
    %v276 = vadd.f32 %v235, %v269
    %v277 = vadd.f32 %v240, %v273
    %v278 = vtanh.pop %v276
    %v279 = vtanh.pop %v277
    %v280 = vld [vmem:[%s4] sm:$0x1]
    %v282 = vlaneseq
    %v283 = vshrl.u32 %v282, 7
    %v284 = vsub.s32 0, %v283
    %v285 = vrot.slane %v280, %v284
    %v287 = vmul.f32 %v278, %v285
    %v288 = vmul.f32 %v279, %v285
    %v289 = vsel %vm84, %v287, 0.0
    %290 = vadd.xlane.f32.xlu0 %v289
    %v291 = vpop.xlane.xlu0 %290
    %v292 = vsel %vm84, %v288, 0.0
    %293 = vadd.xlane.f32.xlu0 %v292
    %v294 = vpop.xlane.xlu0 %293
    %v297 = vlaneseq
    %v298 = vand.u32 %v297, 127
    %v299 = vlaneseq
    %v300 = vshrl.u32 %v299, 7
    %v301 = vsub.s32 %v298, %v300
    %v302 = vrot.slane %v291, %v301
    %v303 = vlaneseq
    %v304 = vshrl.u32 %v303, 7
    %v305 = vsub.s32 %v298, %v304
    %v306 = vrot.slane %v294, %v305
    %vm307 = vcmask 1041409
    %v308 = vsel %vm307, %v306, %v302
    %vm310 = vcmask 58368
    %v311 = vsel %vm310, %v308, -inf
    %312 = vmax.xlane.f32.xlu0 %v311
    %v313 = vpop.xlane.xlu0 %312
    %v315 = vlaneseq
    %v316 = vshrl.u32 %v315, 7
    %v317 = vsub.s32 0, %v316
    %v318 = vrot.slane %v313, %v317
    %v319 = vlaneseq
    %v320 = vshrl.u32 %v319, 7
    %v321 = vsub.s32 1, %v320
    %v322 = vrot.slane %v313, %v321
    %v325 = vsub.f32 %v291, %v318
    %v326 = vsub.f32 %v294, %v322
    %v327 = vmul.f32 %v325, 1.442695
    %v328 = vpow.pop %v327
    %v329 = vmul.f32 %v326, 1.442695
    %v330 = vpow.pop %v329
    %333 = vset.pattern.permute.xlu0 0
    %334 = vperm.xlu0 %333, %v328
    %v335 = vpop.permute.xlu0 %334
    %336 = vset.pattern.permute.xlu0 0
    %337 = vperm.xlu0 %336, %v330
    %v338 = vpop.permute.xlu0 %337
    %v339 = vlaneseq
    %v340 = vshrl.u32 %v339, 7
    %v341 = vsub.s32 %v298, %v340
    %v342 = vrot.slane %v335, %v341
    %v343 = vlaneseq
    %v344 = vshrl.u32 %v343, 7
    %v345 = vsub.s32 %v298, %v344
    %v346 = vrot.slane %v338, %v345
    %v347 = vsel %vm307, %v346, %v342
    %v349 = vsel %vm310, %v347, 0.0
    %350 = vadd.xlane.f32.xlu0 %v349
    %v351 = vpop.xlane.xlu0 %350
    %v353 = vlaneseq
    %v354 = vshrl.u32 %v353, 7
    %v355 = vsub.s32 0, %v354
    %v356 = vrot.slane %v351, %v355
    %v357 = vlaneseq
    %v358 = vshrl.u32 %v357, 7
    %v359 = vsub.s32 1, %v358
    %v360 = vrot.slane %v351, %v359
    %v363 = vrcp.pop %v356
    %v364 = vmul.f32 %v328, %v363
    %v365 = vrcp.pop %v360
    %v366 = vmul.f32 %v330, %v365
    %368 = vset.pattern.permute.xlu0 0
    %369 = vperm.xlu0 %368, %v364
    %v370 = vpop.permute.xlu0 %369
    %373 = vset.pattern.permute.xlu0 0
    %374 = vperm.xlu0 %373, %v366
    %v375 = vpop.permute.xlu0 %374
    %v377 = vmul.f32 %v370, %v77
    %v378 = vmul.f32 %v375, %v78
    %v379 = vsel %vm84, %v377, 0.0
    %v380 = vrot.slane %v379, 4
    %v381 = vadd.f32 %v379, %v380
    %v382 = vrot.slane %v381, 2
    %v383 = vadd.f32 %v381, %v382
    %v384 = vrot.slane %v383, 1
    %v385 = vadd.f32 %v383, %v384
    %v386 = vsel %vm84, %v378, 0.0
    %v387 = vrot.slane %v386, 4
    %v388 = vadd.f32 %v386, %v387
    %v389 = vrot.slane %v388, 2
    %v390 = vadd.f32 %v388, %v389
    %v391 = vrot.slane %v390, 1
    %v392 = vadd.f32 %v390, %v391
    %v395 = vsel %vm307, %v392, %v385
    %vm397 = vcmask 254976
    %398 = vst.msk [vmem:[#allocation10] sm:$0x3] %vm397, %v395
    %v399 = vlaneseq
    %v400 = vshrl.u32 %v399, 7
    %v401 = vsub.s32 %v298, %v400
    %v402 = vrot.slane %v370, %v401
    %v403 = vlaneseq
    %v404 = vshrl.u32 %v403, 7
    %v405 = vsub.s32 %v298, %v404
    %v406 = vrot.slane %v375, %v405
    %v407 = vsel %vm307, %v406, %v402
    %409 = vst.msk [vmem:[#allocation11] sm:$0x3] %vm310, %v407
    // Predicated region
    $region38: #{tpu_custom_call.1} parent=1 // pred_check
      _
    $region39: #{tpu_custom_call.1} parent=1 // pred_check_branch
      %411 = sbr.rel (0) target = $region41
    $region40: #{tpu_custom_call.1} parent=1 // pred_region
      %s413 = ssub.s32 32, 32
      %414 = vsyncadd [#allocation4], %s413
      %s416 = sshll.u32 [#allocation10], 4
      %s417 = int_to_ptr.vmem [resolvable:$true] %s416
      %419 = dma.vmem_to_hbm [thread:$0]  %s417, 32, %s5, [#allocation4]
    $region41: #{tpu_custom_call.1} parent=1 // pred_fallthru
      _
    // Predicated region
    $region42: #{tpu_custom_call.1} parent=1 // pred_check
      _
    $region43: #{tpu_custom_call.1} parent=1 // pred_check_branch
      %421 = sbr.rel (0) target = $region45
    $region44: #{tpu_custom_call.1} parent=1 // pred_region
      %s423 = ssub.s32 32, 32
      %424 = vsyncadd [#allocation12], %s423
      %s426 = sshll.u32 [#allocation11], 4
      %s427 = int_to_ptr.vmem [resolvable:$true] %s426
      %429 = dma.vmem_to_hbm [thread:$0]  %s427, 32, %s6, [#allocation12]
    $region45: #{tpu_custom_call.1} parent=1 // pred_fallthru
      _
    // Predicated region
    $region46: #{tpu_custom_call.1} parent=1 // pred_check
      _
    $region47: #{tpu_custom_call.1} parent=1 // pred_check_branch
      %431 = sbr.rel (0) target = $region49
    $region48: #{tpu_custom_call.1} parent=1 // pred_region
      %432 = dma.done [#allocation4], 32
    $region49: #{tpu_custom_call.1} parent=1 // pred_fallthru
      _
    // Predicated region
    $region50: #{tpu_custom_call.1} parent=1 // pred_check
      _
    $region51: #{tpu_custom_call.1} parent=1 // pred_check_branch
      %434 = sbr.rel (0) target = $region53
    $region52: #{tpu_custom_call.1} parent=1 // pred_region
      %435 = dma.done [#allocation12], 32
    $region53: #{tpu_custom_call.1} parent=1 // pred_fallthru
      _
    %436 = vsyncpa [#allocation3], 1
    %437 = vsyncpa [#allocation6], 1
    %438 = vsyncpa [#allocation9], 1
    %439 = vsyncpa [#allocation4], 1
    %440 = vsyncpa [#allocation12], 1

// kernel: tpu_custom_call.1
$region0: #{tpu_custom_call.1}
  #allocation0 [shape = 'u32[]', space=smem, size = 0x4, offset = 0x4, fixed_abs, tag = 'smem constant byte address 0x4 - core index']
  #allocation1 [shape = 'u32[144,128]{1,0:T(1,128)}', space=vmem, size = 0x12000, scoped, tag = 'internal scratch']
  %s0 = inlined_call_operand.hbm [shape: f32[2,32], index: 0, kind: input, shape index: {}]
  %s1 = inlined_call_operand.hbm [shape: f32[2,8,32], index: 1, kind: input, shape index: {}]
  %s2 = inlined_call_operand.hbm [shape: f32[32,32], index: 2, kind: input, shape index: {}]
  %s3 = inlined_call_operand.hbm [shape: f32[32,32], index: 3, kind: input, shape index: {}]
  %s4 = inlined_call_operand.vmem [shape: f32[1,32], index: 4, kind: input, shape index: {}]
  %s5 = inlined_call_operand.hbm [shape: f32[2,32], index: 5, kind: output, shape index: {0}]
  %s6 = inlined_call_operand.hbm [shape: f32[2,8], index: 6, kind: output, shape index: {1}]
  %7 = xla_tuple %s5, %s6
  %s8 = sld [smem:[#allocation0]]
  $region54: #{tpu_custom_call.1} parent=0
    _
  %s10 = ssub.s32 1, %s8
  %s11 = scalar_select 0, %s10, %s8
  $region1: #{tpu_custom_call.1} parent=0
    #allocation2 [shape = 'u8[1024]{0}', space=vmem, size = 0x400, scoped, tag = 'input window, operand 0, single buffered']
    #allocation3 [shape = 's32[1]{0}', space=sflag, size = 0x4, scoped, tag = 'scoped memory for tpu_custom_call.1']
    #allocation4 [shape = 's32[1]{0}', space=sflag, size = 0x4, scoped, tag = 'scoped memory for tpu_custom_call.1']
    #allocation5 [shape = 'u8[8192]{0}', space=vmem, size = 0x2000, scoped, tag = 'input window, operand 1, single buffered']
    #allocation6 [shape = 's32[1]{0}', space=sflag, size = 0x4, scoped, tag = 'scoped memory for tpu_custom_call.1']
    #allocation7 [shape = 'u8[16384]{0}', space=vmem, size = 0x4000, scoped, tag = 'input window, operand 2, single buffered']
    #allocation8 [shape = 'u8[16384]{0}', space=vmem, size = 0x4000, scoped, tag = 'input window, operand 3, single buffered']
    #allocation9 [shape = 's32[1]{0}', space=sflag, size = 0x4, scoped, tag = 'scoped memory for tpu_custom_call.1']
    #allocation10 [shape = 'u8[1024]{0}', space=vmem, size = 0x400, scoped, tag = 'output window, operand 0, single buffered']
    #allocation11 [shape = 'u8[1024]{0}', space=vmem, size = 0x400, scoped, tag = 'output window, operand 1, single buffered']
    #allocation12 [shape = 's32[1]{0}', space=sflag, size = 0x4, scoped, tag = 'scoped memory for tpu_custom_call.1']
    %12 = vsyncpa [#allocation3], 0
    %13 = vsyncpa [#allocation6], 0
    %14 = vsyncpa [#allocation9], 0
    %15 = vsyncpa [#allocation4], 0
    %16 = vsyncpa [#allocation12], 0
    // Predicated region
    $region2: #{tpu_custom_call.1} parent=1 // pred_check
      _
    $region3: #{tpu_custom_call.1} parent=1 // pred_check_branch
      %18 = sbr.rel (0) target = $region5
    $region4: #{tpu_custom_call.1} parent=1 // pred_region
      %s20 = ssub.s32 32, 32
      %21 = vsyncadd [#allocation3], %s20
      %s23 = sshll.u32 [#allocation2], 4
      %s24 = int_to_ptr.vmem [resolvable:$true] %s23
      %26 = dma.hbm_to_vmem [thread:$0]  %s0, 32, %s24, [#allocation3]
    $region5: #{tpu_custom_call.1} parent=1 // pred_fallthru
      _
    // Predicated region
    $region6: #{tpu_custom_call.1} parent=1 // pred_check
      _
    $region7: #{tpu_custom_call.1} parent=1 // pred_check_branch
      %28 = sbr.rel (0) target = $region9
    $region8: #{tpu_custom_call.1} parent=1 // pred_region
      %s30 = ssub.s32 256, 256
      %31 = vsyncadd [#allocation6], %s30
      %s32 = sshll.u32 [#allocation5], 4
      %s33 = int_to_ptr.vmem [resolvable:$true] %s32
      %38 = dma.hbm_to_vmem [thread:$0]  %s1, 256, %s33, [#allocation6], 128, 128, 8
    $region9: #{tpu_custom_call.1} parent=1 // pred_fallthru
      _
    // Predicated region
    $region10: #{tpu_custom_call.1} parent=1 // pred_check
      _
    $region11: #{tpu_custom_call.1} parent=1 // pred_check_branch
      %40 = sbr.rel (0) target = $region13
    $region12: #{tpu_custom_call.1} parent=1 // pred_region
      %s42 = ssub.s32 512, 512
      %43 = vsyncadd [#allocation6], %s42
      %s44 = sshll.u32 [#allocation7], 4
      %s45 = int_to_ptr.vmem [resolvable:$true] %s44
      %50 = dma.hbm_to_vmem [thread:$0]  %s2, 512, %s45, [#allocation6], 128, 128, 8
    $region13: #{tpu_custom_call.1} parent=1 // pred_fallthru
      _
    // Predicated region
    $region14: #{tpu_custom_call.1} parent=1 // pred_check
      _
    $region15: #{tpu_custom_call.1} parent=1 // pred_check_branch
      %52 = sbr.rel (0) target = $region17
    $region16: #{tpu_custom_call.1} parent=1 // pred_region
      %s54 = ssub.s32 512, 512
      %55 = vsyncadd [#allocation9], %s54
      %s56 = sshll.u32 [#allocation8], 4
      %s57 = int_to_ptr.vmem [resolvable:$true] %s56
      %62 = dma.hbm_to_vmem [thread:$0]  %s3, 512, %s57, [#allocation9], 128, 128, 8
    $region17: #{tpu_custom_call.1} parent=1 // pred_fallthru
      _
    // Predicated region
    $region18: #{tpu_custom_call.1} parent=1 // pred_check
      _
    $region19: #{tpu_custom_call.1} parent=1 // pred_check_branch
      %64 = sbr.rel (0) target = $region21
    $region20: #{tpu_custom_call.1} parent=1 // pred_region
      _
    $region21: #{tpu_custom_call.1} parent=1 // pred_fallthru
      _
    // Predicated region
    $region22: #{tpu_custom_call.1} parent=1 // pred_check
      _
    $region23: #{tpu_custom_call.1} parent=1 // pred_check_branch
      %66 = sbr.rel (0) target = $region25
    $region24: #{tpu_custom_call.1} parent=1 // pred_region
      %67 = dma.done [#allocation3], 32
    $region25: #{tpu_custom_call.1} parent=1 // pred_fallthru
      _
    // Predicated region
    $region26: #{tpu_custom_call.1} parent=1 // pred_check
      _
    $region27: #{tpu_custom_call.1} parent=1 // pred_check_branch
      %69 = sbr.rel (0) target = $region29
    $region28: #{tpu_custom_call.1} parent=1 // pred_region
      %70 = dma.done [#allocation6], 256
    $region29: #{tpu_custom_call.1} parent=1 // pred_fallthru
      _
    // Predicated region
    $region30: #{tpu_custom_call.1} parent=1 // pred_check
      _
    $region31: #{tpu_custom_call.1} parent=1 // pred_check_branch
      %72 = sbr.rel (0) target = $region33
    $region32: #{tpu_custom_call.1} parent=1 // pred_region
      %73 = dma.done [#allocation6], 512
    $region33: #{tpu_custom_call.1} parent=1 // pred_fallthru
      _
    // Predicated region
    $region34: #{tpu_custom_call.1} parent=1 // pred_check
      _
    $region35: #{tpu_custom_call.1} parent=1 // pred_check_branch
      %75 = sbr.rel (0) target = $region37
    $region36: #{tpu_custom_call.1} parent=1 // pred_region
      %76 = dma.done [#allocation9], 512
    $region37: #{tpu_custom_call.1} parent=1 // pred_fallthru
      _
    %v77 = vld [vmem:[#allocation5] sm:$0xff]
    %v78 = vld [vmem:[#allocation5 + $0x8] sm:$0xff]
    %v79 = vld [vmem:[#allocation2] sm:$0x3]
    %v80 = vld [vmem:[#allocation7] sm:$0xff]
    %v81 = vld [vmem:[#allocation7 + $0x8] sm:$0xff]
    %v82 = vld [vmem:[#allocation7 + $0x10] sm:$0xff]
    %v83 = vld [vmem:[#allocation7 + $0x18] sm:$0xff]
    %vm84 = vcmask 261120
    %v86 = vsel %vm84, %v79, 0
    %88 = vmatprep.subr.mxu0 0.0
    %89 = vmatpush1.msra.mxu0 %v80
    %90 = vmatprep.subr.mxu0 0.0
    %91 = vmatpush1.msra.mxu0 %v81
    %92 = vmatprep.subr.mxu0 0.0
    %93 = vmatpush1.msra.mxu0 %v82
    %94 = vmatprep.subr.mxu0 0.0
    %95 = vmatpush1.msra.mxu0 %v83
    %96 = vmatprep.subr.mxu0 0.0
    %97 = vmatpush1.msra.mxu0 0.0
    %98 = vmatprep.subr.mxu0 0.0
    %99 = vmatpush1.msra.mxu0 0.0
    %100 = vmatprep.subr.mxu0 0.0
    %101 = vmatpush1.msra.mxu0 0.0
    %102 = vmatprep.subr.mxu0 0.0
    %103 = vmatpush1.msra.mxu0 0.0
    %104 = vmatprep.subr.mxu0 0.0
    %105 = vmatpush1.msra.mxu0 0.0
    %106 = vmatprep.subr.mxu0 0.0
    %107 = vmatpush1.msra.mxu0 0.0
    %108 = vmatprep.subr.mxu0 0.0
    %109 = vmatpush1.msra.mxu0 0.0
    %110 = vmatprep.subr.mxu0 0.0
    %111 = vmatpush1.msra.mxu0 0.0
    %112 = vmatprep.subr.mxu0 0.0
    %113 = vmatpush1.msra.mxu0 0.0
    %114 = vmatprep.subr.mxu0 0.0
    %115 = vmatpush1.msra.mxu0 0.0
    %116 = vmatprep.subr.mxu0 0.0
    %117 = vmatpush1.msra.mxu0 0.0
    %118 = vmatprep.subr.mxu0 0.0
    %119 = vmatpush1.msra.mxu0 0.0
    %120 = vmatprep.subr.mxu0 0.0
    %121 = vmatpush1.msra.mxu0 0.0
    %122 = vmatprep.subr.mxu0 0.0
    %123 = vmatpush1.msra.mxu0 0.0
    %124 = vmatprep.subr.mxu0 0.0
    %125 = vmatpush1.msra.mxu0 0.0
    %126 = vmatprep.subr.mxu0 0.0
    %127 = vmatpush1.msra.mxu0 0.0
    %128 = vmatprep.subr.mxu0 0.0
    %129 = vmatpush1.msra.mxu0 0.0
    %130 = vmatprep.subr.mxu0 0.0
    %131 = vmatpush1.msra.mxu0 0.0
    %132 = vmatprep.subr.mxu0 0.0
    %133 = vmatpush1.msra.mxu0 0.0
    %134 = vmatprep.subr.mxu0 0.0
    %135 = vmatpush1.msra.mxu0 0.0
    %136 = vmatprep.subr.mxu0 0.0
    %137 = vmatpush1.msra.mxu0 0.0
    %138 = vmatprep.subr.mxu0 0.0
    %139 = vmatpush1.msra.mxu0 0.0
    %140 = vmatprep.subr.mxu0 0.0
    %141 = vmatpush1.msra.mxu0 0.0
    %142 = vmatprep.subr.mxu0 0.0
    %143 = vmatpush1.msra.mxu0 0.0
    %144 = vmatprep.subr.mxu0 0.0
    %145 = vmatpush1.msra.mxu0 0.0
    %146 = vmatprep.subr.mxu0 0.0
    %147 = vmatpush1.msra.mxu0 0.0
    %148 = vmatprep.subr.mxu0 0.0
    %149 = vmatpush1.msra.mxu0 0.0
    %150 = vmatprep.subr.mxu0 0.0
    %151 = vmatpush1.msra.mxu0 0.0
    %152 = vmatprep.mubr.f32.mxu0 0.0
    %153 = vmatmul.mubr.f32.gmra.mrb[0].mxu0 %v86
    %v154 = vpop.f32.mrb[0].mxu0
    %v155 = vadd.f32 0.0, %v154
    %v156 = vpop.f32.mrb[0].mxu0
    %157 = vdwg.mxu0
    %v158 = vld [vmem:[#allocation8] sm:$0xff]
    %v159 = vld [vmem:[#allocation8 + $0x8] sm:$0xff]
    %v160 = vld [vmem:[#allocation8 + $0x10] sm:$0xff]
    %v161 = vld [vmem:[#allocation8 + $0x18] sm:$0xff]
    %v163 = vsel %vm84, %v77, 0
    %v166 = vsel %vm84, %v78, 0
    %168 = vmatprep.subr.mxu0 0.0
    %169 = vmatpush1.msra.mxu0 %v158
    %170 = vmatprep.subr.mxu0 0.0
    %171 = vmatpush1.msra.mxu0 %v159
    %172 = vmatprep.subr.mxu0 0.0
    %173 = vmatpush1.msra.mxu0 %v160
    %174 = vmatprep.subr.mxu0 0.0
    %175 = vmatpush1.msra.mxu0 %v161
    %176 = vmatprep.subr.mxu0 0.0
    %177 = vmatpush1.msra.mxu0 0.0
    %178 = vmatprep.subr.mxu0 0.0
    %179 = vmatpush1.msra.mxu0 0.0
    %180 = vmatprep.subr.mxu0 0.0
    %181 = vmatpush1.msra.mxu0 0.0
    %182 = vmatprep.subr.mxu0 0.0
    %183 = vmatpush1.msra.mxu0 0.0
    %184 = vmatprep.subr.mxu0 0.0
    %185 = vmatpush1.msra.mxu0 0.0
    %186 = vmatprep.subr.mxu0 0.0
    %187 = vmatpush1.msra.mxu0 0.0
    %188 = vmatprep.subr.mxu0 0.0
    %189 = vmatpush1.msra.mxu0 0.0
    %190 = vmatprep.subr.mxu0 0.0
    %191 = vmatpush1.msra.mxu0 0.0
    %192 = vmatprep.subr.mxu0 0.0
    %193 = vmatpush1.msra.mxu0 0.0
    %194 = vmatprep.subr.mxu0 0.0
    %195 = vmatpush1.msra.mxu0 0.0
    %196 = vmatprep.subr.mxu0 0.0
    %197 = vmatpush1.msra.mxu0 0.0
    %198 = vmatprep.subr.mxu0 0.0
    %199 = vmatpush1.msra.mxu0 0.0
    %200 = vmatprep.subr.mxu0 0.0
    %201 = vmatpush1.msra.mxu0 0.0
    %202 = vmatprep.subr.mxu0 0.0
    %203 = vmatpush1.msra.mxu0 0.0
    %204 = vmatprep.subr.mxu0 0.0
    %205 = vmatpush1.msra.mxu0 0.0
    %206 = vmatprep.subr.mxu0 0.0
    %207 = vmatpush1.msra.mxu0 0.0
    %208 = vmatprep.subr.mxu0 0.0
    %209 = vmatpush1.msra.mxu0 0.0
    %210 = vmatprep.subr.mxu0 0.0
    %211 = vmatpush1.msra.mxu0 0.0
    %212 = vmatprep.subr.mxu0 0.0
    %213 = vmatpush1.msra.mxu0 0.0
    %214 = vmatprep.subr.mxu0 0.0
    %215 = vmatpush1.msra.mxu0 0.0
    %216 = vmatprep.subr.mxu0 0.0
    %217 = vmatpush1.msra.mxu0 0.0
    %218 = vmatprep.subr.mxu0 0.0
    %219 = vmatpush1.msra.mxu0 0.0
    %220 = vmatprep.subr.mxu0 0.0
    %221 = vmatpush1.msra.mxu0 0.0
    %222 = vmatprep.subr.mxu0 0.0
    %223 = vmatpush1.msra.mxu0 0.0
    %224 = vmatprep.subr.mxu0 0.0
    %225 = vmatpush1.msra.mxu0 0.0
    %226 = vmatprep.subr.mxu0 0.0
    %227 = vmatpush1.msra.mxu0 0.0
    %228 = vmatprep.subr.mxu0 0.0
    %229 = vmatpush1.msra.mxu0 0.0
    %230 = vmatprep.subr.mxu0 0.0
    %231 = vmatpush1.msra.mxu0 0.0
    %232 = vmatprep.mubr.f32.mxu0 0.0
    %233 = vmatmul.mubr.f32.gmra.mrb[0].mxu0 %v163
    %v234 = vpop.f32.mrb[0].mxu0
    %v235 = vadd.f32 0.0, %v234
    %v236 = vpop.f32.mrb[0].mxu0
    %237 = vmatprep.mubr.f32.mxu0 0.0
    %238 = vmatmul.mubr.f32.gmra.mrb[0].mxu0 %v166
    %v239 = vpop.f32.mrb[0].mxu0
    %v240 = vadd.f32 0.0, %v239
    %v241 = vpop.f32.mrb[0].mxu0
    %242 = vdwg.mxu0
    %v245 = vunpack.c.l.s4 1966171168
    %v246 = vunpack.c.0.s8 %v245
    %v247 = vlaneseq
    %v248 = vshrl.u32 %v247, 7
    %v249 = vsub.s32 %v246, %v248
    %v250 = vrot.slane %v155, %v249
    %v251 = vcombine.high %v250, %v250
    %v253 = vunpack.c.l.s4 1966171168
    %v254 = vunpack.c.0.s8 %v253
    %v255 = vlaneseq
    %v256 = vshrl.u32 %v255, 7
    %v257 = vsub.s32 %v254, %v256
    %v258 = vrot.slane %v250, %v257
    %v260 = vunpack.c.l.s4 1966171168
    %v261 = vunpack.c.0.s8 %v260
    %v262 = vlaneseq
    %v263 = vshrl.u32 %v262, 7
    %v264 = vsub.s32 %v261, %v263
    %v265 = vrot.slane %v251, %v264
    %v266 = vlaneseq
    %v267 = vshrl.u32 %v266, 7
    %v268 = vsub.s32 0, %v267
    %v269 = vrot.slane %v258, %v268
    %v270 = vlaneseq
    %v271 = vshrl.u32 %v270, 7
    %v272 = vsub.s32 0, %v271
    %v273 = vrot.slane %v265, %v272
    %v276 = vadd.f32 %v235, %v269
    %v277 = vadd.f32 %v240, %v273
    %v278 = vtanh.pop %v276
    %v279 = vtanh.pop %v277
    %v280 = vld [vmem:[%s4] sm:$0x1]
    %v282 = vlaneseq
    %v283 = vshrl.u32 %v282, 7
    %v284 = vsub.s32 0, %v283
    %v285 = vrot.slane %v280, %v284
    %v287 = vmul.f32 %v278, %v285
    %v288 = vmul.f32 %v279, %v285
    %v289 = vsel %vm84, %v287, 0.0
    %290 = vadd.xlane.f32.xlu0 %v289
    %v291 = vpop.xlane.xlu0 %290
    %v292 = vsel %vm84, %v288, 0.0
    %293 = vadd.xlane.f32.xlu0 %v292
    %v294 = vpop.xlane.xlu0 %293
    %v297 = vlaneseq
    %v298 = vand.u32 %v297, 127
    %v299 = vlaneseq
    %v300 = vshrl.u32 %v299, 7
    %v301 = vsub.s32 %v298, %v300
    %v302 = vrot.slane %v291, %v301
    %v303 = vlaneseq
    %v304 = vshrl.u32 %v303, 7
    %v305 = vsub.s32 %v298, %v304
    %v306 = vrot.slane %v294, %v305
    %vm307 = vcmask 1041409
    %v308 = vsel %vm307, %v306, %v302
    %vm310 = vcmask 58368
    %v311 = vsel %vm310, %v308, -inf
    %312 = vmax.xlane.f32.xlu0 %v311
    %v313 = vpop.xlane.xlu0 %312
    %v315 = vlaneseq
    %v316 = vshrl.u32 %v315, 7
    %v317 = vsub.s32 0, %v316
    %v318 = vrot.slane %v313, %v317
    %v319 = vlaneseq
    %v320 = vshrl.u32 %v319, 7
    %v321 = vsub.s32 1, %v320
    %v322 = vrot.slane %v313, %v321
    %v325 = vsub.f32 %v291, %v318
    %v326 = vsub.f32 %v294, %v322
    %v327 = vmul.f32 %v325, 1.442695
    %v328 = vpow.pop %v327
    %v329 = vmul.f32 %v326, 1.442695
    %v330 = vpow.pop %v329
    %333 = vset.pattern.permute.xlu0 0
    %334 = vperm.xlu0 %333, %v328
    %v335 = vpop.permute.xlu0 %334
    %336 = vset.pattern.permute.xlu0 0
    %337 = vperm.xlu0 %336, %v330
    %v338 = vpop.permute.xlu0 %337
    %v339 = vlaneseq
    %v340 = vshrl.u32 %v339, 7
    %v341 = vsub.s32 %v298, %v340
    %v342 = vrot.slane %v335, %v341
    %v343 = vlaneseq
    %v344 = vshrl.u32 %v343, 7
    %v345 = vsub.s32 %v298, %v344
    %v346 = vrot.slane %v338, %v345
    %v347 = vsel %vm307, %v346, %v342
    %v349 = vsel %vm310, %v347, 0.0
    %350 = vadd.xlane.f32.xlu0 %v349
    %v351 = vpop.xlane.xlu0 %350
    %v353 = vlaneseq
    %v354 = vshrl.u32 %v353, 7
    %v355 = vsub.s32 0, %v354
    %v356 = vrot.slane %v351, %v355
    %v357 = vlaneseq
    %v358 = vshrl.u32 %v357, 7
    %v359 = vsub.s32 1, %v358
    %v360 = vrot.slane %v351, %v359
    %v363 = vrcp.pop %v356
    %v364 = vmul.f32 %v328, %v363
    %v365 = vrcp.pop %v360
    %v366 = vmul.f32 %v330, %v365
    %368 = vset.pattern.permute.xlu0 0
    %369 = vperm.xlu0 %368, %v364
    %v370 = vpop.permute.xlu0 %369
    %373 = vset.pattern.permute.xlu0 0
    %374 = vperm.xlu0 %373, %v366
    %v375 = vpop.permute.xlu0 %374
    %v377 = vmul.f32 %v370, %v77
    %v378 = vmul.f32 %v375, %v78
    %v379 = vsel %vm84, %v377, 0.0
    %v380 = vrot.slane %v379, 4
    %v381 = vadd.f32 %v379, %v380
    %v382 = vrot.slane %v381, 2
    %v383 = vadd.f32 %v381, %v382
    %v384 = vrot.slane %v383, 1
    %v385 = vadd.f32 %v383, %v384
    %v386 = vsel %vm84, %v378, 0.0
    %v387 = vrot.slane %v386, 4
    %v388 = vadd.f32 %v386, %v387
    %v389 = vrot.slane %v388, 2
    %v390 = vadd.f32 %v388, %v389
    %v391 = vrot.slane %v390, 1
    %v392 = vadd.f32 %v390, %v391
    %v395 = vsel %vm307, %v392, %v385
    %vm397 = vcmask 254976
    %398 = vst.msk [vmem:[#allocation10] sm:$0x3] %vm397, %v395
    %v399 = vlaneseq
    %v400 = vshrl.u32 %v399, 7
    %v401 = vsub.s32 %v298, %v400
    %v402 = vrot.slane %v370, %v401
    %v403 = vlaneseq
    %v404 = vshrl.u32 %v403, 7
    %v405 = vsub.s32 %v298, %v404
    %v406 = vrot.slane %v375, %v405
    %v407 = vsel %vm307, %v406, %v402
    %409 = vst.msk [vmem:[#allocation11] sm:$0x3] %vm310, %v407
    // Predicated region
    $region38: #{tpu_custom_call.1} parent=1 // pred_check
      _
    $region39: #{tpu_custom_call.1} parent=1 // pred_check_branch
      %411 = sbr.rel (0) target = $region41
    $region40: #{tpu_custom_call.1} parent=1 // pred_region
      %s413 = ssub.s32 32, 32
      %414 = vsyncadd [#allocation4], %s413
      %s416 = sshll.u32 [#allocation10], 4
      %s417 = int_to_ptr.vmem [resolvable:$true] %s416
      %419 = dma.vmem_to_hbm [thread:$0]  %s417, 32, %s5, [#allocation4]
    $region41: #{tpu_custom_call.1} parent=1 // pred_fallthru
      _
    // Predicated region
    $region42: #{tpu_custom_call.1} parent=1 // pred_check
      _
    $region43: #{tpu_custom_call.1} parent=1 // pred_check_branch
      %421 = sbr.rel (0) target = $region45
    $region44: #{tpu_custom_call.1} parent=1 // pred_region
      %s423 = ssub.s32 32, 32
      %424 = vsyncadd [#allocation12], %s423
      %s426 = sshll.u32 [#allocation11], 4
      %s427 = int_to_ptr.vmem [resolvable:$true] %s426
      %429 = dma.vmem_to_hbm [thread:$0]  %s427, 32, %s6, [#allocation12]
    $region45: #{tpu_custom_call.1} parent=1 // pred_fallthru
      _
    // Predicated region
    $region46: #{tpu_custom_call.1} parent=1 // pred_check
      _
    $region47: #{tpu_custom_call.1} parent=1 // pred_check_branch
      %431 = sbr.rel (0) target = $region49
    $region48: #{tpu_custom_call.1} parent=1 // pred_region
      %432 = dma.done [#allocation4], 32
    $region49: #{tpu_custom_call.1} parent=1 // pred_fallthru
      _
    // Predicated region
    $region50: #{tpu_custom_call.1} parent=1 // pred_check
      _
    $region51: #{tpu_custom_call.1} parent=1 // pred_check_branch
      %434 = sbr.rel (0) target = $region53
    $region52: #{tpu_custom_call.1} parent=1 // pred_region
      %435 = dma.done [#allocation12], 32
    $region53: #{tpu_custom_call.1} parent=1 // pred_fallthru
      _
    %436 = vsyncpa [#allocation3], 1
    %437 = vsyncpa [#allocation6], 1
    %438 = vsyncpa [#allocation9], 1
    %439 = vsyncpa [#allocation4], 1
    %440 = vsyncpa [#allocation12], 1

</llo_original>
